<compile_context>
chip_gen: v7x
topology: tpu7x:2x2x1
jax: 0.10.0
libtpu: 0.0.40
codegen_flags: <defaults>
</compile_context>

<pallas_src>
import jax
import jax.numpy as jnp
from jax.experimental import pallas as pl
from jax.experimental.pallas import tpu as pltpu


_SENTINEL = -10000.0  # matches the PyTorch module


def _round_up(x, m):
    return ((x + m - 1) // m) * m


def max_pooling(last_hidden_state, attention_mask, *, block_bytes=4 * 1024 * 1024):
    """Pallas equivalent of MaxPooling.forward.

    Args:
      last_hidden_state: [B, S, H] float array.
      attention_mask:    [B, S] array (any numeric dtype; 0 = masked).
      block_bytes:       approximate per-step VMEM budget for the streamed inputs.

    Returns:
      [B, H] array, same dtype as last_hidden_state.
    """
    B, S, H = last_hidden_state.shape
    dtype = last_hidden_state.dtype
    assert jnp.issubdtype(dtype, jnp.floating), "MaxPooling expects a float hidden dtype"
    itemsize = jnp.dtype(dtype).itemsize

    # ---- Hidden (lane) tiling: full width => contiguous DMA. Split only for B == 1
    # so the v7x megacore still gets >= 2 "parallel" grid items.
    if B == 1 and H > 128:
        th = _round_up(pl.cdiv(H, 2), 128)
    else:
        th = H                                   # equals full array dim -> always legal
    n_h = pl.cdiv(H, th)

    # ---- Sequence tiling from a VMEM byte budget (hidden row + lane-padded f32 mask row).
    th_vmem = _round_up(th, 128)
    bytes_per_row = th_vmem * itemsize + 128 * 4
    ts = max(8, (block_bytes // bytes_per_row) // 8 * 8)
    ts = min(ts, _round_up(S, 8))
    n_s = pl.cdiv(S, ts)

    # ---- Mask as float32 (exactly the PyTorch `.float() == 0` comparison) with a
    # trailing-1 lane layout so it broadcasts against (1, ts, th) in-kernel.
    mask_f = attention_mask.astype(jnp.float32)
    # Number of sequence tiles that contain at least one useful (unmasked) row.
    valid_len = jnp.max(
        jnp.where(mask_f != 0, jnp.arange(1, S + 1, dtype=jnp.int32)[None, :], 0),
        axis=1)
    n_valid_tiles = ((valid_len + ts - 1) // ts).astype(jnp.int32)      # (B,)
    mask_f = mask_f.reshape(B, S, 1)

    def kernel(nv_ref, h_ref, m_ref, o_ref, acc_ref):
        b = pl.program_id(0)
        s = pl.program_id(2)
        nseq = pl.num_programs(2)
        nv = nv_ref[b]
        _, ts_b, th_b = h_ref.shape
        neg_inf = jnp.asarray(-jnp.inf, dtype=acc_ref.dtype)
        sent = jnp.asarray(_SENTINEL, dtype=acc_ref.dtype)

        @pl.when(s == 0)
        def _init():
            acc_ref[...] = jnp.full(acc_ref.shape, -jnp.inf, dtype=acc_ref.dtype)

        @pl.when(s < nv)                       # skip compute on fully-padded tiles
        def _update():
            h = h_ref[...]                                          # (1, ts, th)
            m = m_ref[...]                                          # (1, ts, 1) f32
            rows = jax.lax.broadcasted_iota(jnp.int32, (1, ts_b, 1), 1) + s * ts_b
            vals = jnp.where(m == 0, sent, h)                       # masked -> -10000
            vals = jnp.where(rows < S, vals, neg_inf)               # OOB rows -> -inf
            # Deferred sublane collapse: elementwise max across vreg rows (VPU only).
            part = jnp.max(vals[0].reshape(ts_b // 8, 8, th_b), axis=0)   # (8, th)
            acc_ref[...] = jnp.maximum(acc_ref[...], part)

        @pl.when(s == nseq - 1)
        def _finalize():
            res = jnp.max(acc_ref[...], axis=0, keepdims=True)[None]      # (1, 1, th)
            # Skipped tiles contain only in-bounds masked rows, each worth -10000.
            floor = jnp.where(nv == nseq, neg_inf, sent)
            o_ref[...] = jnp.maximum(res, floor).astype(o_ref.dtype)

    def _clamped_ss(ss, nv_ref, b):
        return jnp.minimum(ss, jnp.maximum(nv_ref[b], 1) - 1)

    def h_map(b, hh, ss, nv_ref):
        return (b, _clamped_ss(ss, nv_ref, b), hh)

    def m_map(b, hh, ss, nv_ref):
        return (b, _clamped_ss(ss, nv_ref, b), 0)

    def o_map(b, hh, ss, nv_ref):
        return (b, 0, hh)

    cost = pl.CostEstimate(
        flops=2 * B * S * H,                                   # compare + max per element
        transcendentals=0,
        bytes_accessed=B * S * H * itemsize + B * S * 4 + B * H * itemsize,
    )

    out = pl.pallas_call(
        kernel,
        out_shape=jax.ShapeDtypeStruct((B, 1, H), dtype),
        grid_spec=pltpu.PrefetchScalarGridSpec(
            num_scalar_prefetch=1,
            grid=(B, n_h, n_s),                               # reduction (seq) axis last
            in_specs=[
                pl.BlockSpec((1, ts, th), h_map),
                pl.BlockSpec((1, ts, 1), m_map),
            ],
            out_specs=pl.BlockSpec((1, 1, th), o_map),
            scratch_shapes=[pltpu.VMEM((8, th), dtype)],
        ),
        compiler_params=pltpu.CompilerParams(
            dimension_semantics=("parallel", "parallel", "arbitrary")),
        cost_estimate=cost,
    )(n_valid_tiles, last_hidden_state, mask_f)
    return out[:, 0, :]


def _reference(last_hidden_state, attention_mask):
    mask_exp = attention_mask[:, :, None].astype(jnp.float32)
    sent = jnp.asarray(_SENTINEL, last_hidden_state.dtype)
    return jnp.max(jnp.where(mask_exp == 0, sent, last_hidden_state), axis=1)


if __name__ == "__main__":
    key = jax.random.PRNGKey(0)
    k1, k2, k3, k4 = jax.random.split(key, 4)

    # Test 1: small shapes, single tile per batch element.
    B, S, H = 2, 8, 32
    h1 = jax.random.normal(k1, (B, S, H), dtype=jnp.float32)
    lens1 = jnp.array([5, 3], dtype=jnp.int32)
    m1 = (jnp.arange(S)[None, :] < lens1[:, None]).astype(jnp.int32)
    out1 = jax.block_until_ready(max_pooling(h1, m1))
    assert out1.shape == (B, H)
    assert jnp.allclose(out1, _reference(h1, m1)), "mismatch vs reference (test 1)"

    # Test 2: ragged S (20), ragged H (200), multi seq-tiles (tiny VMEM budget forces
    # ts=8 -> 3 seq tiles), padded-tile skipping (lens 13/7) and a fully-masked row.
    B2, S2, H2 = 3, 20, 200
    h2 = jax.random.normal(k2, (B2, S2, H2), dtype=jnp.float32)
    lens2 = jnp.array([13, 7, 0], dtype=jnp.int32)
    m2 = (jnp.arange(S2)[None, :] < lens2[:, None]).astype(jnp.int32)
    out2 = jax.block_until_ready(max_pooling(h2, m2, block_bytes=8 * 1024))
    assert out2.shape == (B2, H2)
    assert jnp.allclose(out2, _reference(h2, m2)), "mismatch vs reference (test 2)"

    # Test 3: batch 1 -> hidden axis split into two parallel tiles (ragged H edge).
    B3, S3, H3 = 1, 16, 300
    h3 = jax.random.normal(k3, (B3, S3, H3), dtype=jnp.float32)
    lens3 = jnp.array([11], dtype=jnp.int32)
    m3 = (jnp.arange(S3)[None, :] < lens3[:, None]).astype(jnp.int32)
    out3 = jax.block_until_ready(max_pooling(h3, m3))
    assert out3.shape == (B3, H3)
    assert jnp.allclose(out3, _reference(h3, m3)), "mismatch vs reference (test 3)"

    # Test 4: bfloat16 path (sentinel rounds identically in kernel and reference).
    B4, S4, H4 = 2, 24, 256
    h4 = jax.random.normal(k4, (B4, S4, H4), dtype=jnp.bfloat16)
    lens4 = jnp.array([24, 10], dtype=jnp.int32)
    m4 = (jnp.arange(S4)[None, :] < lens4[:, None]).astype(jnp.int32)
    out4 = jax.block_until_ready(max_pooling(h4, m4))
    ref4 = _reference(h4, m4)
    assert out4.shape == (B4, H4)
    assert jnp.allclose(out4.astype(jnp.float32), ref4.astype(jnp.float32)), \
        "mismatch vs reference (test 4)"

    print("KERNEL_OK")
</pallas_src>

<mosaic_0001>
module attributes {stable_mosaic.version = 11 : i64} {
  func.func @kernel(%arg0: i32, %arg1: i32, %arg2: i32, %arg3: memref<2xi32, #tpu.memory_space<smem>>, %arg4: memref<1x8x32xf32, #tpu.memory_space<vmem>>, %arg5: memref<1x8x1xf32, #tpu.memory_space<vmem>>, %arg6: memref<1x1x32xf32, #tpu.memory_space<vmem>>, %arg7: memref<8x32xf32, #tpu.memory_space<vmem>>) attributes {dimension_semantics = [#tpu.dimension_semantics<parallel>, #tpu.dimension_semantics<parallel>, #tpu.dimension_semantics<arbitrary>], iteration_bounds = array<i64: 2, 1, 1>, scalar_prefetch = 1 : i64, scratch_operands = 1 : i64, tpu.core_type = #tpu.core_type<tc>, window_params = [{transform_indices = @transform_0, window_bounds = array<i64: 1, 8, 32>}, {transform_indices = @transform_1, window_bounds = array<i64: 1, 8, 1>}, {transform_indices = @transform_2, window_bounds = array<i64: 1, 1, 32>}]} {
    %0 = arith.index_cast %arg0 : i32 to index
    %1 = memref.load %arg3[%0] : memref<2xi32, #tpu.memory_space<smem>>
    %c0_i32 = arith.constant 0 : i32
    %2 = arith.cmpi eq, %arg2, %c0_i32 : i32
    %3 = arith.extui %2 : i1 to i32
    %c0_i32_0 = arith.constant 0 : i32
    %4 = arith.cmpi ne, %3, %c0_i32_0 : i32
    scf.if %4 {
      %cst_7 = arith.constant 0xFF800000 : f32
      %11 = vector.broadcast %cst_7 : f32 to vector<8x32xf32>
      %c0 = arith.constant 0 : index
      %c0_8 = arith.constant 0 : index
      %12 = vector.load %arg7[%c0, %c0_8] : memref<8x32xf32, #tpu.memory_space<vmem>>, vector<8x32xf32>
      tpu.vector_store %arg7[%c0, %c0_8], %11 {strides = array<i32>} : memref<8x32xf32, #tpu.memory_space<vmem>>, vector<8x32xf32>,
    } else {
    }
    %5 = arith.cmpi slt, %arg2, %1 : i32
    %6 = arith.extui %5 : i1 to i32
    %cst = arith.constant -1.000000e+04 : f32
    %cst_1 = arith.constant 0xFF800000 : f32
    %c0_i32_2 = arith.constant 0 : i32
    %7 = arith.cmpi ne, %6, %c0_i32_2 : i32
    scf.if %7 {
      %c0 = arith.constant 0 : index
      %c0_7 = arith.constant 0 : index
      %c0_8 = arith.constant 0 : index
      %11 = vector.load %arg4[%c0, %c0_7, %c0_8] : memref<1x8x32xf32, #tpu.memory_space<vmem>>, vector<1x8x32xf32>
      %c0_9 = arith.constant 0 : index
      %c0_10 = arith.constant 0 : index
      %c0_11 = arith.constant 0 : index
      %12 = vector.load %arg5[%c0_9, %c0_10, %c0_11] : memref<1x8x1xf32, #tpu.memory_space<vmem>>, vector<1x8x1xf32>
      %13 = tpu.iota {dimensions = array<i32: 1>} : vector<1x8x1xi32>
      %c8_i32 = arith.constant 8 : i32
      %14 = arith.muli %arg2, %c8_i32 : i32
      %15 = vector.broadcast %14 : i32 to vector<1x8x1xi32>
      %16 = arith.addi %13, %15 : vector<1x8x1xi32>
      %cst_12 = arith.constant 0.000000e+00 : f32
      %17 = vector.broadcast %cst_12 : f32 to vector<1x8x1xf32>
      %18 = arith.cmpf oeq, %12, %17 : vector<1x8x1xf32>
      %19 = vector.shape_cast %18 : vector<1x8x1xi1> to vector<1x8x1xi1>
      %20 = vector.broadcast %19 : vector<1x8x1xi1> to vector<1x8x32xi1>
      %21 = vector.broadcast %cst : f32 to vector<1x8x32xf32>
      %22 = arith.select %20, %21, %11 : vector<1x8x32xi1>, vector<1x8x32xf32>
      %c8_i32_13 = arith.constant 8 : i32
      %23 = vector.broadcast %c8_i32_13 : i32 to vector<1x8x1xi32>
      %24 = arith.cmpi slt, %16, %23 : vector<1x8x1xi32>
      %25 = vector.shape_cast %24 : vector<1x8x1xi1> to vector<1x8x1xi1>
      %26 = vector.broadcast %25 : vector<1x8x1xi1> to vector<1x8x32xi1>
      %27 = vector.broadcast %cst_1 : f32 to vector<1x8x32xf32>
      %28 = arith.select %26, %22, %27 : vector<1x8x32xi1>, vector<1x8x32xf32>
      %29 = vector.shape_cast %28 : vector<1x8x32xf32> to vector<8x32xf32>
      %30 = vector.shape_cast %29 : vector<8x32xf32> to vector<1x8x32xf32>
      %cst_14 = arith.constant dense<0xFF800000> : vector<8x32xf32>
      %31 = vector.multi_reduction <maximumf>, %30, %cst_14 [0] : vector<1x8x32xf32> to vector<8x32xf32>
      %c0_15 = arith.constant 0 : index
      %c0_16 = arith.constant 0 : index
      %32 = vector.load %arg7[%c0_15, %c0_16] : memref<8x32xf32, #tpu.memory_space<vmem>>, vector<8x32xf32>
      %33 = arith.maximumf %32, %31 : vector<8x32xf32>
      %c0_17 = arith.constant 0 : index
      %c0_18 = arith.constant 0 : index
      %34 = vector.load %arg7[%c0_17, %c0_18] : memref<8x32xf32, #tpu.memory_space<vmem>>, vector<8x32xf32>
      tpu.vector_store %arg7[%c0_17, %c0_18], %33 {strides = array<i32>} : memref<8x32xf32, #tpu.memory_space<vmem>>, vector<8x32xf32>,
    } else {
    }
    %c0_i32_3 = arith.constant 0 : i32
    %8 = arith.cmpi eq, %arg2, %c0_i32_3 : i32
    %9 = arith.extui %8 : i1 to i32
    %cst_4 = arith.constant 0xFF800000 : f32
    %cst_5 = arith.constant -1.000000e+04 : f32
    %c0_i32_6 = arith.constant 0 : i32
    %10 = arith.cmpi ne, %9, %c0_i32_6 : i32
    scf.if %10 {
      %c0 = arith.constant 0 : index
      %c0_7 = arith.constant 0 : index
      %11 = vector.load %arg7[%c0, %c0_7] : memref<8x32xf32, #tpu.memory_space<vmem>>, vector<8x32xf32>
      %cst_8 = arith.constant dense<0xFF800000> : vector<32xf32>
      %12 = vector.multi_reduction <maximumf>, %11, %cst_8 [0] : vector<8x32xf32> to vector<32xf32>
      %13 = vector.shape_cast %12 : vector<32xf32> to vector<1x32xf32>
      %14 = vector.shape_cast %13 : vector<1x32xf32> to vector<1x1x32xf32>
      %c1_i32 = arith.constant 1 : i32
      %15 = arith.cmpi eq, %1, %c1_i32 : i32
      %16 = arith.select %15, %cst_4, %cst_5 : f32
      %17 = vector.broadcast %16 : f32 to vector<1x1x32xf32>
      %18 = arith.maximumf %14, %17 : vector<1x1x32xf32>
      %c0_9 = arith.constant 0 : index
      %c0_10 = arith.constant 0 : index
      %c0_11 = arith.constant 0 : index
      %19 = vector.load %arg6[%c0_9, %c0_10, %c0_11] : memref<1x1x32xf32, #tpu.memory_space<vmem>>, vector<1x1x32xf32>
      tpu.vector_store %arg6[%c0_9, %c0_10, %c0_11], %18 {strides = array<i32>} : memref<1x1x32xf32, #tpu.memory_space<vmem>>, vector<1x1x32xf32>,
    } else {
    }
    return
  }
  func.func @transform_0(%arg0: i32, %arg1: i32, %arg2: i32, %arg3: memref<2xi32, #tpu.memory_space<smem>>) -> (i32, i32, i32) {
    %0 = arith.index_cast %arg0 : i32 to index
    %1 = memref.load %arg3[%0] : memref<2xi32, #tpu.memory_space<smem>>
    %c1_i32 = arith.constant 1 : i32
    %2 = arith.maxsi %1, %c1_i32 : i32
    %c1_i32_0 = arith.constant 1 : i32
    %3 = arith.subi %2, %c1_i32_0 : i32
    %4 = arith.minsi %arg2, %3 : i32
    %c0_i32 = arith.constant 0 : i32
    return %arg0, %4, %arg1 : i32, i32, i32
  }
  func.func @transform_1(%arg0: i32, %arg1: i32, %arg2: i32, %arg3: memref<2xi32, #tpu.memory_space<smem>>) -> (i32, i32, i32) {
    %0 = arith.index_cast %arg0 : i32 to index
    %1 = memref.load %arg3[%0] : memref<2xi32, #tpu.memory_space<smem>>
    %c1_i32 = arith.constant 1 : i32
    %2 = arith.maxsi %1, %c1_i32 : i32
    %c1_i32_0 = arith.constant 1 : i32
    %3 = arith.subi %2, %c1_i32_0 : i32
    %4 = arith.minsi %arg2, %3 : i32
    %c0_i32 = arith.constant 0 : i32
    %c0_i32_1 = arith.constant 0 : i32
    return %arg0, %4, %c0_i32 : i32, i32, i32
  }
  func.func @transform_2(%arg0: i32, %arg1: i32, %arg2: i32, %arg3: memref<2xi32, #tpu.memory_space<smem>>) -> (i32, i32, i32) {
    %c0_i32 = arith.constant 0 : i32
    %c0_i32_0 = arith.constant 0 : i32
    return %arg0, %c0_i32, %arg1 : i32, i32, i32
  }
}

</mosaic_0001>

<llo_original>
// kernel: tpu_custom_call.1
$region0: #{tpu_custom_call.1}
  #allocation0 [shape = 'u32[]', space=smem, size = 0x4, offset = 0x4, fixed_abs, tag = 'smem constant byte address 0x4 - core index']
  #allocation1 [shape = 'u32[144,128]{1,0:T(1,128)}', space=vmem, size = 0x12000, scoped, tag = 'internal scratch']
  #allocation2 [shape = 'f32[8,32]{1,0:T(8,128)}', space=vmem, size = 0x1000, scoped, tag = 'scratch operand']
  #allocation3 [shape = 's32[1]{0}', space=sflag, size = 0x4, scoped, tag = 'scoped memory for tpu_custom_call.1']
  #allocation4 [shape = 'u8[512]{0}', space=smem, size = 0x200, scoped, tag = 'prefetched SMEM operand 0']
  %s0 = inlined_call_operand.vmem [shape: s32[2], index: 0, kind: input, shape index: {}]
  %s1 = inlined_call_operand.vmem [shape: f32[2,8,32], index: 1, kind: input, shape index: {}]
  %s2 = inlined_call_operand.vmem [shape: f32[2,8,1], index: 2, kind: input, shape index: {}]
  %s3 = inlined_call_operand.hbm [shape: f32[2,1,32], index: 3, kind: output, shape index: {}]
  %s4 = sld [smem:[#allocation0]]
  $region53: #{tpu_custom_call.1} parent=0
    _
  %s6 = ssub.s32 1, %s4
  %s7 = scalar_select 0, %s6, %s4
  %s8 = sshll.u32 %s0, 4
  %s9 = int_to_ptr.vmem [resolvable:$true] %s8
  %11 = dma.vmem_to_smem %s9, 16, [#allocation4], [#allocation3]
  %12 = dma.done [#allocation3], 16
  %13 = sfence
  $region1: #{tpu_custom_call.1} parent=0
    #allocation5 [shape = 'u8[1024]{0}', space=vmem, size = 0x400, scoped, tag = 'output window, operand 0']
    #allocation6 [shape = 's32[2]{0}', space=sflag, size = 0x8, scoped, tag = 'scoped memory for tpu_custom_call.1']
    %14 = vsyncpa [#allocation6], 0
    %s15 = scalar_lea.sflag [#allocation6], 1
    %16 = vsyncpa %s15, 0
    loop: start=0, step=1, limit=4
    $region2: #{tpu_custom_call.1} parent=1 // loop_pre_header
      _
    $region3: #{tpu_custom_call.1} parent=1 // loop_header
      %s18 = sphi 0, %s22
      %p19 = scmp.ge.s32.totalorder %s18, 4
      %s25 = sphi 0, %s44
      %s26 = sphi 0, %s40
      %s27 = sphi 0, %s36
      %s28 = sphi 0, %s25
      %s29 = sphi 0, %s26
      %s30 = sphi 0, %s27
      %s31 = sphi 0, %s28
      %s32 = sphi 0, %s29
      %s33 = sphi 0, %s30
      %s63 = sphi 0, %s65
      %s66 = sphi 0, %s63
      %s67 = sphi 0, %s66
      %s83 = sphi 0, %s67
      %s103 = sphi 0, %s105
      %s106 = sphi 0, %s103
      %s107 = sphi 0, %s106
      %s123 = sphi 0, %s107
      %s131 = sphi 0, %s133
      %s134 = sphi 0, %s131
      %s135 = sphi 0, %s134
      %s151 = sphi 0, %s135
    $region4: #{tpu_custom_call.1} parent=1 // loop_header_branch
      %21 = sbr.rel (%p19) target = $region8
    $region5: #{tpu_custom_call.1} parent=1 // loop_body
      %s23 = ssub.s32 %s18, 1
      %s24 = ssub.s32 %s18, 2
      %s34 = sadd.s32 1, %s27
      %p35 = scmp.ge.s32.totalorder %s34, 1
      %s36 = scalar_select %p35, 0, %s34
      %s37 = sadd.s32 1, %s26
      %s38 = scalar_select %p35, %s37, %s26
      %p39 = scmp.ge.s32.totalorder %s38, 1
      %s40 = scalar_select %p39, 0, %s38
      %s41 = sadd.s32 1, %s25
      %s42 = scalar_select %p39, %s41, %s25
      %p43 = scmp.ge.s32.totalorder %s42, 2
      %s44 = scalar_select %p43, 0, %s42
      %s45 = sld [smem:[#allocation4 + %s25]]
      %p46 = scmp.gt.s32.totalorder %s45, 1
      %s47 = scalar_select %p46, %s45, 1
      %s48 = ssub.s32 %s47, 1
      %p49 = scmp.lt.s32.totalorder %s27, %s48
      %s50 = scalar_select %p49, %s27, %s48
      %s51 = sld [smem:[#allocation4 + %s44]]
      %p52 = scmp.gt.s32.totalorder %s51, 1
      %s53 = scalar_select %p52, %s51, 1
      %s54 = ssub.s32 %s53, 1
      %p55 = scmp.lt.s32.totalorder %s36, %s54
      %s56 = scalar_select %p55, %s36, %s54
      %s57 = ssub.s32 %s25, %s44
      %s58 = ssub.s32 %s50, %s56
      %s59 = sor.u32 %s57, %s58
      %s60 = ssub.s32 %s26, %s40
      %s61 = sor.u32 %s59, %s60
      %p62 = scmp.eq.s32.totalorder %s61, 0
      %s64 = sadd.s32 %s63, 1
      %s65 = scalar_select %p62, %s63, %s64
      %p68 = pneg %p62
      %p69 = scmp.eq.s32.totalorder %s18, 1
      %p70 = por %p68, %p69
      %p71 = scmp.ne.s32.totalorder %s63, %s66
      %p72 = scmp.eq.s32.totalorder %s18, 0
      %p73 = por %p71, %p72
      %p74 = scmp.ne.s32.totalorder %s63, %s66
      %p75 = scmp.eq.s32.totalorder %s23, 1
      %p76 = por %p74, %p75
      %p77 = scmp.ne.s32.totalorder %s66, %s67
      %p78 = scmp.eq.s32.totalorder %s23, 0
      %p79 = por %p77, %p78
      %p80 = scmp.ne.s32.totalorder %s66, %s67
      %p81 = scmp.eq.s32.totalorder %s24, 1
      %p82 = por %p80, %p81
      %p84 = scmp.ne.s32.totalorder %s67, %s83
      %p85 = scmp.eq.s32.totalorder %s24, 0
      %p86 = por %p84, %p85
      %s87 = sld [smem:[#allocation4 + %s25]]
      %p88 = scmp.gt.s32.totalorder %s87, 1
      %s89 = scalar_select %p88, %s87, 1
      %s90 = ssub.s32 %s89, 1
      %p91 = scmp.lt.s32.totalorder %s27, %s90
      %s92 = scalar_select %p91, %s27, %s90
      %s93 = sld [smem:[#allocation4 + %s44]]
      %p94 = scmp.gt.s32.totalorder %s93, 1
      %s95 = scalar_select %p94, %s93, 1
      %s96 = ssub.s32 %s95, 1
      %p97 = scmp.lt.s32.totalorder %s36, %s96
      %s98 = scalar_select %p97, %s36, %s96
      %s99 = ssub.s32 %s25, %s44
      %s100 = ssub.s32 %s92, %s98
      %s101 = sor.u32 %s99, %s100
      %p102 = scmp.eq.s32.totalorder %s101, 0
      %s104 = sadd.s32 %s103, 1
      %s105 = scalar_select %p102, %s103, %s104
      %p108 = pneg %p102
      %p109 = scmp.eq.s32.totalorder %s18, 1
      %p110 = por %p108, %p109
      %p111 = scmp.ne.s32.totalorder %s103, %s106
      %p112 = scmp.eq.s32.totalorder %s18, 0
      %p113 = por %p111, %p112
      %p114 = scmp.ne.s32.totalorder %s103, %s106
      %p115 = scmp.eq.s32.totalorder %s23, 1
      %p116 = por %p114, %p115
      %p117 = scmp.ne.s32.totalorder %s106, %s107
      %p118 = scmp.eq.s32.totalorder %s23, 0
      %p119 = por %p117, %p118
      %p120 = scmp.ne.s32.totalorder %s106, %s107
      %p121 = scmp.eq.s32.totalorder %s24, 1
      %p122 = por %p120, %p121
      %p124 = scmp.ne.s32.totalorder %s107, %s123
      %p125 = scmp.eq.s32.totalorder %s24, 0
      %p126 = por %p124, %p125
      %s127 = ssub.s32 %s25, %s44
      %s128 = ssub.s32 %s26, %s40
      %s129 = sor.u32 %s127, %s128
      %p130 = scmp.eq.s32.totalorder %s129, 0
      %s132 = sadd.s32 %s131, 1
      %s133 = scalar_select %p130, %s131, %s132
      %p136 = pneg %p130
      %p137 = scmp.eq.s32.totalorder %s18, 1
      %p138 = por %p136, %p137
      %p139 = scmp.ne.s32.totalorder %s131, %s134
      %p140 = scmp.eq.s32.totalorder %s18, 0
      %p141 = por %p139, %p140
      %p142 = scmp.ne.s32.totalorder %s131, %s134
      %p143 = scmp.eq.s32.totalorder %s23, 1
      %p144 = por %p142, %p143
      %p145 = scmp.ne.s32.totalorder %s134, %s135
      %p146 = scmp.eq.s32.totalorder %s23, 0
      %p147 = por %p145, %p146
      %p148 = scmp.ne.s32.totalorder %s134, %s135
      %p149 = scmp.eq.s32.totalorder %s24, 1
      %p150 = por %p148, %p149
      %p152 = scmp.ne.s32.totalorder %s135, %s151
      %p153 = scmp.eq.s32.totalorder %s24, 0
      %p154 = por %p152, %p153
      %p155 = scmp.le.s32.totalorder 1, %s18
      %p156 = scmp.lt.s32.totalorder %s18, 3
      %p157 = pnand %p155, %p156
      %p158 = pneg %p157
      // Predicated region
      $region9: #{tpu_custom_call.1} parent=5 // pred_check
        _
      $region10: #{tpu_custom_call.1} parent=5 // pred_check_branch
        %160 = sbr.rel (%p157) target = $region12
      $region11: #{tpu_custom_call.1} parent=5 // pred_region
        %s161 = ssub.s32 %s18, 1
      $region12: #{tpu_custom_call.1} parent=5 // pred_fallthru
        _
      %p162 = scmp.lt.s32.totalorder %s18, 2
      // Predicated region
      $region13: #{tpu_custom_call.1} parent=5 // pred_check
        %p163 = pneg %p162
      $region14: #{tpu_custom_call.1} parent=5 // pred_check_branch
        %165 = sbr.rel (%p163) target = $region16
      $region15: #{tpu_custom_call.1} parent=5 // pred_region
        // Predicated region
        $region17: #{tpu_custom_call.1} parent=15 // pred_check
          %p166 = pneg %p73
        $region18: #{tpu_custom_call.1} parent=15 // pred_check_branch
          %168 = sbr.rel (%p166) target = $region20
        $region19: #{tpu_custom_call.1} parent=15 // pred_region
          %s169 = sld [smem:[#allocation4 + %s25]]
          %p170 = scmp.gt.s32.totalorder %s169, 1
          %s171 = scalar_select %p170, %s169, 1
          %s172 = ssub.s32 %s171, 1
          %p173 = scmp.lt.s32.totalorder %s27, %s172
          %s174 = scalar_select %p173, %s27, %s172
          %p175 = scmp.lt.s32.totalorder %s25, 1
          %s176 = scalar_select %p175, %s25, 1
          %p177 = scmp.lt.s32.totalorder %s174, 0
          %s178 = scalar_select %p177, %s174, 0
          %p179 = scmp.lt.s32.totalorder %s26, 0
          %s180 = scalar_select %p179, %s26, 0
          %s181 = sadd.s32 %s180, %s178
          %s182 = sadd.s32 %s181, %s176
          %s183 = smul.addr %s182, 8
          %s184 = scalar_lea.vmem %s1, %s183
          %s185 = sld [smem:[#allocation4 + %s25]]
          %p186 = scmp.gt.s32.totalorder %s185, 1
          %s187 = scalar_select %p186, %s185, 1
          %s188 = ssub.s32 %s187, 1
          %p189 = scmp.lt.s32.totalorder %s27, %s188
          %s190 = scalar_select %p189, %s27, %s188
        $region20: #{tpu_custom_call.1} parent=15 // pred_fallthru
          _
        // Predicated region
        $region21: #{tpu_custom_call.1} parent=15 // pred_check
          %p191 = pneg %p113
        $region22: #{tpu_custom_call.1} parent=15 // pred_check_branch
          %193 = sbr.rel (%p191) target = $region24
        $region23: #{tpu_custom_call.1} parent=15 // pred_region
          %s194 = sld [smem:[#allocation4 + %s25]]
          %p195 = scmp.gt.s32.totalorder %s194, 1
          %s196 = scalar_select %p195, %s194, 1
          %s197 = ssub.s32 %s196, 1
          %p198 = scmp.lt.s32.totalorder %s27, %s197
          %s199 = scalar_select %p198, %s27, %s197
          %p200 = scmp.lt.s32.totalorder %s25, 1
          %s201 = scalar_select %p200, %s25, 1
          %p202 = scmp.lt.s32.totalorder %s199, 0
          %s203 = scalar_select %p202, %s199, 0
          %s204 = sadd.s32 %s203, %s201
          %s205 = smul.addr %s204, 8
          %s206 = scalar_lea.vmem %s2, %s205
          %s207 = sld [smem:[#allocation4 + %s25]]
          %p208 = scmp.gt.s32.totalorder %s207, 1
          %s209 = scalar_select %p208, %s207, 1
          %s210 = ssub.s32 %s209, 1
          %p211 = scmp.lt.s32.totalorder %s27, %s210
          %s212 = scalar_select %p211, %s27, %s210
        $region24: #{tpu_custom_call.1} parent=15 // pred_fallthru
          _
      $region16: #{tpu_custom_call.1} parent=5 // pred_fallthru
        _
      %p213 = scmp.le.s32.totalorder 1, %s18
      %p214 = scmp.lt.s32.totalorder %s18, 3
      %p215 = pnand %p213, %p214
      %p216 = pneg %p215
      // Predicated region
      $region25: #{tpu_custom_call.1} parent=5 // pred_check
        _
      $region26: #{tpu_custom_call.1} parent=5 // pred_check_branch
        %218 = sbr.rel (%p215) target = $region28
      $region27: #{tpu_custom_call.1} parent=5 // pred_region
        %s219 = ssub.s32 %s18, 1
        %s220 = sld [smem:[#allocation4 + %s28]]
        %p221 = scmp.gt.s32.totalorder %s220, 1
        %s222 = scalar_select %p221, %s220, 1
        %s223 = ssub.s32 %s222, 1
        %p224 = scmp.lt.s32.totalorder %s30, %s223
        %s225 = scalar_select %p224, %s30, %s223
        %p226 = scmp.lt.s32.totalorder %s28, 1
        %s227 = scalar_select %p226, %s28, 1
        %p228 = scmp.lt.s32.totalorder %s225, 0
        %s229 = scalar_select %p228, %s225, 0
        %p230 = scmp.lt.s32.totalorder %s29, 0
        %s231 = scalar_select %p230, %s29, 0
        %s232 = sadd.s32 %s231, %s229
        %s233 = sadd.s32 %s232, %s227
        %s234 = smul.addr %s233, 8
        %s235 = scalar_lea.vmem %s1, %s234
        %p236 = pneg %p79
        %p237 = pneg %p76
        %s238 = sld [smem:[#allocation4 + %s28]]
        %p239 = scmp.gt.s32.totalorder %s238, 1
        %s240 = scalar_select %p239, %s238, 1
        %s241 = ssub.s32 %s240, 1
        %p242 = scmp.lt.s32.totalorder %s30, %s241
        %s243 = scalar_select %p242, %s30, %s241
        %p244 = scmp.lt.s32.totalorder %s28, 1
        %s245 = scalar_select %p244, %s28, 1
        %p246 = scmp.lt.s32.totalorder %s243, 0
        %s247 = scalar_select %p246, %s243, 0
        %s248 = sadd.s32 %s247, %s245
        %s249 = smul.addr %s248, 8
        %s250 = scalar_lea.vmem %s2, %s249
        %p251 = pneg %p119
        %p252 = pneg %p116
        %p253 = pneg %p147
        %p254 = pneg %p144
        %s255 = sand.u32 %s134, 1
        %s256 = scalar_lea.sflag [#allocation6], %s255
        %s257 = sand.u32 %s134, 1
        %s258 = scalar_lea.vmem [#allocation5], %s257
        %s259 = sld [smem:[#allocation4 + %s28]]
        %p260 = scmp.gt.s32.totalorder %s259, 1
        %s261 = scalar_select %p260, %s259, 1
        %s262 = ssub.s32 %s261, 1
        %p263 = scmp.lt.s32.totalorder %s30, %s262
        %s264 = scalar_select %p263, %s30, %s262
        %p265 = scmp.lt.s32.totalorder %s28, 1
        %s266 = scalar_select %p265, %s28, 1
        %p267 = scmp.lt.s32.totalorder %s264, 0
        %s268 = scalar_select %p267, %s264, 0
        %p269 = scmp.lt.s32.totalorder %s29, 0
        %s270 = scalar_select %p269, %s29, 0
        %s271 = sadd.s32 %s270, %s268
        %s272 = sadd.s32 %s271, %s266
        %s273 = smul.addr %s272, 8
        %s274 = scalar_lea.vmem %s1, %s273
        %s275 = sld [smem:[#allocation4 + %s28]]
        %p276 = scmp.gt.s32.totalorder %s275, 1
        %s277 = scalar_select %p276, %s275, 1
        %s278 = ssub.s32 %s277, 1
        %p279 = scmp.lt.s32.totalorder %s30, %s278
        %s280 = scalar_select %p279, %s30, %s278
        %s281 = sld [smem:[#allocation4 + %s28]]
        %p282 = scmp.gt.s32.totalorder %s281, 1
        %s283 = scalar_select %p282, %s281, 1
        %s284 = ssub.s32 %s283, 1
        %p285 = scmp.lt.s32.totalorder %s30, %s284
        %s286 = scalar_select %p285, %s30, %s284
        %p287 = scmp.lt.s32.totalorder %s28, 1
        %s288 = scalar_select %p287, %s28, 1
        %p289 = scmp.lt.s32.totalorder %s286, 0
        %s290 = scalar_select %p289, %s286, 0
        %s291 = sadd.s32 %s290, %s288
        %s292 = smul.addr %s291, 8
        %s293 = scalar_lea.vmem %s2, %s292
        %s294 = sld [smem:[#allocation4 + %s28]]
        %p295 = scmp.gt.s32.totalorder %s294, 1
        %s296 = scalar_select %p295, %s294, 1
        %s297 = ssub.s32 %s296, 1
        %p298 = scmp.lt.s32.totalorder %s30, %s297
        %s299 = scalar_select %p298, %s30, %s297
        %s300 = sld [smem:[#allocation4 + %s28]]
        %p301 = scmp.eq.s32.totalorder %s30, 0
        // Predicated region
        $region29: #{tpu_custom_call.1} parent=27 // pred_check
          %p302 = pneg %p301
        $region30: #{tpu_custom_call.1} parent=27 // pred_check_branch
          %304 = sbr.rel (%p302) target = $region32
        $region31: #{tpu_custom_call.1} parent=27 // pred_region
          %vm305 = vcmask 261120
          %306 = vst.msk [vmem:[#allocation2] sm:$0xff] %vm305, -inf
        $region32: #{tpu_custom_call.1} parent=27 // pred_fallthru
          _
        %p307 = scmp.lt.s32.totalorder %s30, %s300
        // Predicated region
        $region33: #{tpu_custom_call.1} parent=27 // pred_check
          %p308 = pneg %p307
        $region34: #{tpu_custom_call.1} parent=27 // pred_check_branch
          %310 = sbr.rel (%p308) target = $region36
        $region35: #{tpu_custom_call.1} parent=27 // pred_region
          %v311 = vld [vmem:[%s274] sm:$0xff]
          %v312 = vld [vmem:[%s293] sm:$0xff]
          %v313 = vlaneseq
          %v314 = vshrl.u32 %v313, 7
          %s315 = smul.u32 %s30, 8
          %v316 = vstv %s315
          %v317 = vadd.s32 %v314, %v316
          %vm318 = vcmp.eq.f32.partialorder %v312, 0.0
          %v319 = vsel %vm318, 1, 0
          %320 = vset.pattern.permute.xlu0 0
          %321 = vperm.xlu0 %320, %v319
          %v322 = vpop.permute.xlu0 %321
          %vm323 = vcmp.eq.s32.totalorder %v322, 1
          %v324 = vsel %vm323, -10000.0, %v311
          %vm325 = vcmp.lt.s32.totalorder %v317, 8
          %v326 = vsel %vm325, 1, 0
          %vm327 = vcmp.eq.s32.totalorder %v326, 1
          %v328 = vsel %vm327, %v324, -inf
          %v329 = vld [vmem:[#allocation2] sm:$0xff]
          %v330 = vmax.f32 %v329, %v328
          %vm331 = vcmask 261120
          %332 = vst.msk [vmem:[#allocation2] sm:$0xff] %vm331, %v330
        $region36: #{tpu_custom_call.1} parent=27 // pred_fallthru
          _
        // Predicated region
        $region37: #{tpu_custom_call.1} parent=27 // pred_check
          %p333 = pneg %p301
        $region38: #{tpu_custom_call.1} parent=27 // pred_check_branch
          %335 = sbr.rel (%p333) target = $region40
        $region39: #{tpu_custom_call.1} parent=27 // pred_region
          %v336 = vld [vmem:[#allocation2] sm:$0xff]
          %vm337 = vcmask 261120
          %v338 = vsel %vm337, %v336, -inf
          %v339 = vrot.slane %v338, 4
          %v340 = vmax.f32 %v338, %v339
          %v341 = vrot.slane %v340, 2
          %v342 = vmax.f32 %v340, %v341
          %v343 = vrot.slane %v342, 1
          %v344 = vmax.f32 %v342, %v343
          %p345 = scmp.eq.s32.totalorder %s300, 1
          %s346 = scalar_select %p345, -inf, -10000.0
          %v347 = vstv %s346
          %v348 = vmax.f32 %v344, %v347
          %vm349 = vcmask 253952
          %350 = vst.msk [vmem:[%s258] sm:$0x1] %vm349, %v348
        $region40: #{tpu_custom_call.1} parent=27 // pred_fallthru
          _
        %s351 = sand.u32 %s134, 1
        %s352 = scalar_lea.sflag [#allocation6], %s351
        %s353 = sand.u32 %s134, 1
        %s354 = scalar_lea.vmem [#allocation5], %s353
        // Predicated region
        $region41: #{tpu_custom_call.1} parent=27 // pred_check
          %p355 = pneg %p144
        $region42: #{tpu_custom_call.1} parent=27 // pred_check_branch
          %357 = sbr.rel (%p355) target = $region44
        $region43: #{tpu_custom_call.1} parent=27 // pred_region
          %s359 = ssub.s32 16, 16
          %360 = vsyncadd %s352, %s359
          %s361 = sadd.s32 %s29, %s28
          %s362 = smul.addr %s361, 16
          %s363 = scalar_lea.hbm %s3, %s362
          %s365 = sshll.u32 %s354, 4
          %s366 = int_to_ptr.vmem [resolvable:$true] %s365
          %368 = dma.vmem_to_hbm [thread:$0]  %s366, 16, %s363, %s352
        $region44: #{tpu_custom_call.1} parent=27 // pred_fallthru
          _
      $region28: #{tpu_custom_call.1} parent=5 // pred_fallthru
        _
      %p369 = scmp.le.s32.totalorder 2, %s18
      // Predicated region
      $region45: #{tpu_custom_call.1} parent=5 // pred_check
        %p370 = pneg %p369
      $region46: #{tpu_custom_call.1} parent=5 // pred_check_branch
        %372 = sbr.rel (%p370) target = $region48
      $region47: #{tpu_custom_call.1} parent=5 // pred_region
        %s373 = ssub.s32 %s18, 2
        // Predicated region
        $region49: #{tpu_custom_call.1} parent=47 // pred_check
          %p374 = pneg %p150
        $region50: #{tpu_custom_call.1} parent=47 // pred_check_branch
          %376 = sbr.rel (%p374) target = $region52
        $region51: #{tpu_custom_call.1} parent=47 // pred_region
          %s377 = sand.u32 %s135, 1
          %s378 = scalar_lea.sflag [#allocation6], %s377
          %s379 = sand.u32 %s135, 1
          %s380 = scalar_lea.vmem [#allocation5], %s379
          %381 = dma.done %s378, 16
        $region52: #{tpu_custom_call.1} parent=47 // pred_fallthru
          _
      $region48: #{tpu_custom_call.1} parent=5 // pred_fallthru
        _
    $region6: #{tpu_custom_call.1} parent=1 // loop_footer
      %s22 = sadd.s32 1, %s18
    $region7: #{tpu_custom_call.1} parent=1 // loop_footer_branch
      %17 = sbr.rel target = $region3
    $region8: #{tpu_custom_call.1} parent=1 // loop_exit
      _
    %382 = vsyncpa [#allocation6], 1
    %s383 = scalar_lea.sflag [#allocation6], 1
    %384 = vsyncpa %s383, 1

</llo_original>
